<compile_context>
chip_gen: v7x
topology: tpu7x:2x2x1
jax: 0.10.0
libtpu: 0.0.40
codegen_flags: <defaults>
</compile_context>

<pallas_src>
import functools
import math

import jax
import jax.numpy as jnp
from jax.experimental import pallas as pl
from jax.experimental.pallas import tpu as pltpu


_LANES = 128
_SQRT_2_OVER_PI = 0.7978845608028654
_TANH_CUBIC = 0.044715


def _round_up(x, m):
    return ((x + m - 1) // m) * m


def _sublane_multiple(dtype):
    # rows per native vreg tile: 8 for 32-bit, 16 for 16-bit, 32 for 8-bit.
    return 8 * max(1, 4 // jnp.dtype(dtype).itemsize)


def _normal_cdf_tanh(z):
    # Phi(z) ~= 0.5*(1 + tanh(sqrt(2/pi)*(z + 0.044715*z^3)))  (GELU-style,
    # max abs CDF error ~1e-3).  One EUP tanh + a handful of VALU ops; plenty
    # accurate for an auxiliary regularizer.
    z3 = z * z * z
    return 0.5 * (1.0 + jnp.tanh(_SQRT_2_OVER_PI * (z + _TANH_CUBIC * z3)))


def _moe_aux_stats_kernel(
    gate_ref, logit_ref, noise_ref, mod_ref,      # inputs
    out_ref,                                      # output: (4*e_pad+8, 128) partials
    iota_ref,                                     # scratch: (1, tile_t) int32
    *,
    e_pad, tile_t, num_experts, num_tokens, k_sel, steps_per_split,
    inv_sigma_cdf, sigma_routing, eps, image_idx, text_idx,
):
    split = pl.program_id(0)
    step = pl.program_id(1)

    @pl.when(step == 0)
    def _init():
        iota_ref[...] = jax.lax.broadcasted_iota(jnp.int32, (1, tile_t), 1)
        out_ref[...] = jnp.zeros_like(out_ref)

    gate = gate_ref[...].astype(jnp.float32)       # (e_pad, tile_t), lane-dense
    logits = logit_ref[...].astype(jnp.float32)    # (e_pad, tile_t)
    noise = noise_ref[...].astype(jnp.float32)     # (e_pad, tile_t)
    mod = mod_ref[...]                             # (1, tile_t) int32

    # Token-validity mask: padding tokens never contribute to any statistic.
    tok_start = (split * steps_per_split + step) * tile_t
    tok_valid = iota_ref[...] < (num_tokens - tok_start)        # (1, tile_t) bool
    tok_valid_f = tok_valid.astype(jnp.float32)

    # Expert-padding mask (only if num_experts was rounded up to a sublane mult).
    if e_pad == num_experts:
        logits_m = logits
    else:
        exp_valid = jax.lax.broadcasted_iota(jnp.int32, (e_pad, 1), 0) < num_experts
        logits_m = jnp.where(exp_valid, logits, -1e30)

    # ---- load loss: eta_k over experts (sublane axis), then 1 - Phi ----------
    noisy = logits_m + noise * sigma_routing
    eta = jnp.max(noisy, axis=0, keepdims=True)                 # (1, tile_t)
    for _ in range(k_sel - 1):
        # NOTE: ties with the running max are all discarded, so with exactly
        # tied noisy logits and k>1 eta_k can differ from a true top-k.
        noisy = jnp.where(noisy >= eta, -1e30, noisy)
        eta = jnp.max(noisy, axis=0, keepdims=True)
    # p_sel = 1 - Phi((eta - logit)/sigma) = Phi((logit - eta)/sigma)
    p_sel = _normal_cdf_tanh((logits_m - eta) * inv_sigma_cdf)

    # ---- z-loss: logsumexp over experts ---------------------------------------
    m = jnp.max(logits_m, axis=0, keepdims=True)
    lse = m + jnp.log(jnp.sum(jnp.exp(logits_m - m), axis=0, keepdims=True))

    # ---- per-token entropy + per-modality masks --------------------------------
    ent = -jnp.sum(gate * jnp.log(gate + eps), axis=0, keepdims=True)   # (1, T)
    img_mask = jnp.logical_and(mod == image_idx, tok_valid).astype(jnp.float32)
    txt_mask = jnp.logical_and(mod == text_idx, tok_valid).astype(jnp.float32)

    # ---- fold every per-step quantity down to 128 lanes (pure VALU tree), -----
    # ---- then one small RMW into the persistent output block ------------------
    n_chunks = tile_t // _LANES

    def fold(x):                                  # (rows, tile_t) -> (rows, 128)
        chunks = [x[:, c * _LANES:(c + 1) * _LANES] for c in range(n_chunks)]
        while len(chunks) > 1:
            nxt = [chunks[i] + chunks[i + 1] for i in range(0, len(chunks) - 1, 2)]
            if len(chunks) % 2:
                nxt.append(chunks[-1])
            chunks = nxt
        return chunks[0]

    # per-expert partial sums (experts on sublanes, 128 folded token lanes)
    out_ref[0 * e_pad:1 * e_pad, :] += fold(gate)                   # importance
    out_ref[1 * e_pad:2 * e_pad, :] += fold(p_sel * tok_valid_f)    # load
    out_ref[2 * e_pad:3 * e_pad, :] += fold(gate * img_mask)        # global ent img
    out_ref[3 * e_pad:4 * e_pad, :] += fold(gate * txt_mask)        # global ent txt
    # scalar partial sums (one (1,128) row each)
    base = 4 * e_pad
    out_ref[base + 0:base + 1, :] += fold(lse * lse * tok_valid_f)  # z-loss
    out_ref[base + 1:base + 2, :] += fold(ent * img_mask)           # local ent img
    out_ref[base + 2:base + 3, :] += fold(ent * txt_mask)           # local ent txt
    out_ref[base + 3:base + 4, :] += fold(img_mask)                 # img token count
    out_ref[base + 4:base + 5, :] += fold(txt_mask)                 # txt token count


def moe_auxiliary_losses(
    gating_probs_all, router_logits_all, modality_indices,
    *,
    num_experts, k_selected_experts=1,
    noise_stddev_routing=None, noise_stddev_cdf=None, eps=1e-8,
    global_entropy_threshold_image=math.log(20.0),
    global_entropy_threshold_text=math.log(9.0),
    image_modality_idx=0, text_modality_idx=1,
    use_importance_loss=True, use_load_loss=True, use_z_loss=True,
    use_local_entropy_loss=True, use_global_entropy_loss=True,
    noise=None,                    # optional (T,E) std-normal for verification
    noise_dtype=jnp.bfloat16,      # dtype of wrapper-generated noise stream
    seed=0,
    inputs_expert_major=False,     # True: inputs already (E, T); skips transpose
    tile_tokens=8192,
    num_splits=2,                  # leading "parallel" grid axis (v7x: 2 TCs)
    vmem_budget_bytes=20 * 1024 * 1024,
):
    if inputs_expert_major:
        n_exp, n_tok = gating_probs_all.shape
    else:
        n_tok, n_exp = gating_probs_all.shape
    assert n_exp == num_experts
    assert 1 <= k_selected_experts <= num_experts
    if n_tok == 0:
        return jnp.float32(0.0)
    if noise_stddev_routing is None:
        noise_stddev_routing = 1.0 / num_experts
    if noise_stddev_cdf is None:
        noise_stddev_cdf = 1.0 / num_experts
    num_splits = max(1, int(num_splits))

    # Expert padding to the dtype-native sublane multiple (8 f32 / 16 bf16).
    e_pad = _round_up(num_experts,
                      max(_sublane_multiple(gating_probs_all.dtype),
                          _sublane_multiple(router_logits_all.dtype)))

    # Tile: multiple of 128 lanes, capped by the VMEM budget (double-buffered
    # streams) and by the padded token count.
    g_it = jnp.dtype(gating_probs_all.dtype).itemsize
    l_it = jnp.dtype(router_logits_all.dtype).itemsize
    n_it = jnp.dtype(noise.dtype if noise is not None else noise_dtype).itemsize
    bytes_per_tok = 2 * (e_pad * (g_it + l_it + n_it) + 4) + 4
    max_by_vmem = max(_LANES, (vmem_budget_bytes // bytes_per_tok) // _LANES * _LANES)
    tile_t = min(_round_up(max(int(tile_tokens), 1), _LANES),
                 max_by_vmem, _round_up(n_tok, _LANES))

    steps_total = -(-n_tok // tile_t)
    steps_total = _round_up(steps_total, num_splits)
    steps_per_split = steps_total // num_splits
    t_pad = steps_total * tile_t

    # ---- layout plumbing: expert-major (E_pad, T_pad) streams -----------------
    # TODO(synk): emit (E, T) from the router to make this a pure no-op.
    def to_expert_major(x):
        if not inputs_expert_major:
            x = jnp.transpose(x)
        return jnp.pad(x, ((0, e_pad - n_exp), (0, t_pad - x.shape[1])))

    gate_em = to_expert_major(gating_probs_all)
    logit_em = to_expert_major(router_logits_all)
    if noise is None:
        # NOTE: realization depends on (e_pad, t_pad), i.e. on the tiling.
        noise_em = jax.random.normal(jax.random.PRNGKey(seed), (e_pad, t_pad),
                                     dtype=noise_dtype)
    else:
        noise_em = to_expert_major(noise)
    mod_em = jnp.pad(modality_indices.astype(jnp.int32).reshape(1, n_tok),
                     ((0, 0), (0, t_pad - n_tok)), constant_values=-1)

    rows = 4 * e_pad + 8        # 4 per-expert blocks + 5 scalar rows (+3 pad)

    kernel = functools.partial(
        _moe_aux_stats_kernel,
        e_pad=e_pad, tile_t=tile_t, num_experts=num_experts, num_tokens=n_tok,
        k_sel=int(k_selected_experts), steps_per_split=steps_per_split,
        inv_sigma_cdf=float(1.0 / (noise_stddev_cdf + eps)),
        sigma_routing=float(noise_stddev_routing), eps=float(eps),
        image_idx=int(image_modality_idx), text_idx=int(text_modality_idx),
    )

    tok_map = lambda s, i: (0, s * steps_per_split + i)
    grid_spec = pltpu.PrefetchScalarGridSpec(
        num_scalar_prefetch=0,
        grid=(num_splits, steps_per_split),
        in_specs=[pl.BlockSpec((e_pad, tile_t), tok_map),
                  pl.BlockSpec((e_pad, tile_t), tok_map),
                  pl.BlockSpec((e_pad, tile_t), tok_map),
                  pl.BlockSpec((1, tile_t), tok_map)],
        out_specs=pl.BlockSpec((None, rows, _LANES), lambda s, i: (s, 0, 0)),
        scratch_shapes=[pltpu.VMEM((1, tile_t), jnp.int32)],
    )
    cost = pl.CostEstimate(
        flops=int(50 * t_pad * e_pad),
        transcendentals=int(4 * t_pad * e_pad),
        bytes_accessed=int(t_pad * (e_pad * (g_it + l_it + n_it) + 4)),
    )
    cparams = pltpu.CompilerParams(
        dimension_semantics=("parallel", "arbitrary"),
        vmem_limit_bytes=32 * 1024 * 1024,
    )

    partials = pl.pallas_call(
        kernel,
        out_shape=jax.ShapeDtypeStruct((num_splits, rows, _LANES), jnp.float32),
        grid_spec=grid_spec,
        compiler_params=cparams,
        cost_estimate=cost,
    )(gate_em, logit_em, noise_em, mod_em)

    # ---- tiny JAX epilogue (~30 flops): combine per-split partials ------------
    acc = jnp.sum(partials, axis=0)                           # (rows, 128)
    exp_rows = jnp.sum(acc[:4 * e_pad], axis=1).reshape(4, e_pad)[:, :num_experts]
    imp_e, load_e, gpi_e, gpt_e = exp_rows[0], exp_rows[1], exp_rows[2], exp_rows[3]
    scal = jnp.sum(acc[4 * e_pad:4 * e_pad + 5], axis=1)      # (5,)
    lse2_sum, enti_sum, entt_sum, ci, ct = scal[0], scal[1], scal[2], scal[3], scal[4]

    def cv2(v):                                               # (std/mean)^2
        if num_experts <= 1:
            return jnp.float32(0.0)
        mean = jnp.mean(v)
        var = jnp.mean((v - mean) ** 2)
        return var / (mean + eps) ** 2

    si, st = jnp.maximum(ci, 1.0), jnp.maximum(ct, 1.0)
    total = jnp.float32(0.0)
    n_active = 0
    if use_importance_loss:
        total = total + cv2(imp_e); n_active += 1
    if use_load_loss:
        total = total + cv2(load_e); n_active += 1
    if use_z_loss:
        total = total + lse2_sum / float(n_tok); n_active += 1
    if use_local_entropy_loss:
        total = total + jnp.where(ci > 0, enti_sum / si, 0.0)
        total = total + jnp.where(ct > 0, entt_sum / st, 0.0)
        n_active += 2
    if use_global_entropy_loss:
        avg_img = gpi_e / si
        avg_txt = gpt_e / st
        h_img = -jnp.sum(avg_img * jnp.log(avg_img + eps))
        h_txt = -jnp.sum(avg_txt * jnp.log(avg_txt + eps))
        total = total + jnp.where(
            ci > 0, jnp.maximum(global_entropy_threshold_image - h_img, 0.0), 0.0)
        total = total + jnp.where(
            ct > 0, jnp.maximum(global_entropy_threshold_text - h_txt, 0.0), 0.0)
        n_active += 2
    return total / n_active if n_active > 0 else total


# ------------------------- pure-JAX reference (for verification) -------------
def _cv2_ref(x, eps):
    mean = jnp.mean(x)
    var = jnp.mean((x - mean) ** 2)
    return var / (mean + eps) ** 2


def moe_auxiliary_losses_ref(gate, logits, mod, noise, *, num_experts, k,
                             sigma_routing, sigma_cdf, eps, thr_img, thr_txt,
                             image_idx=0, text_idx=1):
    loss_imp = _cv2_ref(jnp.sum(gate, axis=0), eps)

    noisy = logits + noise * sigma_routing
    eta_k = jax.lax.top_k(noisy, k)[0][:, -1]
    cdf_arg = (eta_k[:, None] - logits) / (sigma_cdf + eps)
    p_sel = 1.0 - jax.scipy.stats.norm.cdf(cdf_arg)
    loss_load = _cv2_ref(jnp.sum(p_sel, axis=0), eps)

    lse = jax.scipy.special.logsumexp(logits, axis=1)
    loss_z = jnp.mean(lse ** 2)

    ent = -jnp.sum(gate * jnp.log(gate + eps), axis=1)
    img_m = (mod == image_idx).astype(jnp.float32)
    txt_m = (mod == text_idx).astype(jnp.float32)
    ci, ct = jnp.sum(img_m), jnp.sum(txt_m)
    loc_img = jnp.where(ci > 0, jnp.sum(ent * img_m) / jnp.maximum(ci, 1.0), 0.0)
    loc_txt = jnp.where(ct > 0, jnp.sum(ent * txt_m) / jnp.maximum(ct, 1.0), 0.0)

    avg_img = jnp.sum(gate * img_m[:, None], axis=0) / jnp.maximum(ci, 1.0)
    avg_txt = jnp.sum(gate * txt_m[:, None], axis=0) / jnp.maximum(ct, 1.0)
    h_img = -jnp.sum(avg_img * jnp.log(avg_img + eps))
    h_txt = -jnp.sum(avg_txt * jnp.log(avg_txt + eps))
    glb_img = jnp.where(ci > 0, jnp.maximum(thr_img - h_img, 0.0), 0.0)
    glb_txt = jnp.where(ct > 0, jnp.maximum(thr_txt - h_txt, 0.0), 0.0)

    total = loss_imp + loss_load + loss_z + loc_img + loc_txt + glb_img + glb_txt
    return total / 7.0


if __name__ == "__main__":
    num_tokens = 200           # deliberately NOT a tile multiple -> exercises masking
    num_experts = 8
    k_selected = 1
    eps = 1e-8
    sigma_routing = 1.0 / num_experts
    sigma_cdf = 1.0 / num_experts
    thr_img = math.log(20.0)
    thr_txt = math.log(9.0)

    key = jax.random.PRNGKey(0)
    k_logits, k_noise, k_mod = jax.random.split(key, 3)

    router_logits = jax.random.normal(k_logits, (num_tokens, num_experts), jnp.float32)
    gating_probs = jax.nn.softmax(router_logits, axis=-1)
    modality_indices = jax.random.randint(k_mod, (num_tokens,), 0, 2, dtype=jnp.int32)
    noise = jax.random.normal(k_noise, (num_tokens, num_experts), jnp.float32)

    ref = moe_auxiliary_losses_ref(
        gating_probs, router_logits, modality_indices, noise,
        num_experts=num_experts, k=k_selected,
        sigma_routing=sigma_routing, sigma_cdf=sigma_cdf, eps=eps,
        thr_img=thr_img, thr_txt=thr_txt)
    ref = jax.block_until_ready(ref)

    # Path A: explicit noise, small tile, single split -> exercises multi-step
    # accumulation along the "arbitrary" axis + token masking; checkable
    # against the pure-JAX reference (same noise realization).
    out_a = moe_auxiliary_losses(
        gating_probs, router_logits, modality_indices,
        num_experts=num_experts, k_selected_experts=k_selected,
        noise_stddev_routing=sigma_routing, noise_stddev_cdf=sigma_cdf, eps=eps,
        global_entropy_threshold_image=thr_img,
        global_entropy_threshold_text=thr_txt,
        noise=noise, tile_tokens=128, num_splits=1,
    )
    out_a = jax.block_until_ready(out_a)
    assert jnp.isfinite(out_a), "kernel produced non-finite loss"
    # Tolerance covers the tanh-cubic normal-CDF approximation in the load loss.
    assert abs(float(out_a) - float(ref)) <= 5e-3 * (abs(float(ref)) + 1.0), (
        f"mismatch: kernel={float(out_a)} ref={float(ref)}")

    # Path B: production defaults — wrapper-generated bf16 noise stream, big
    # tile, 2 grid splits (parallel axis, per-split partials + JAX epilogue).
    out_b = moe_auxiliary_losses(
        gating_probs, router_logits, modality_indices,
        num_experts=num_experts, k_selected_experts=k_selected,
        noise_stddev_routing=sigma_routing, noise_stddev_cdf=sigma_cdf, eps=eps,
        global_entropy_threshold_image=thr_img,
        global_entropy_threshold_text=thr_txt,
        seed=1234,
    )
    out_b = jax.block_until_ready(out_b)
    assert jnp.isfinite(out_b), "default-path kernel produced non-finite loss"
    # Only the (small) load loss depends on the noise realization.
    assert abs(float(out_b) - float(ref)) < 0.5, (
        f"default-path loss implausibly far from reference: "
        f"{float(out_b)} vs {float(ref)}")

    print("KERNEL_OK")
</pallas_src>

<mosaic_0001>
module attributes {stable_mosaic.version = 11 : i64} {
  func.func @_moe_aux_stats_kernel(%arg0: i32, %arg1: i32, %arg2: memref<8x128xf32, #tpu.memory_space<vmem>>, %arg3: memref<8x128xf32, #tpu.memory_space<vmem>>, %arg4: memref<8x128xf32, #tpu.memory_space<vmem>>, %arg5: memref<1x128xi32, #tpu.memory_space<vmem>>, %arg6: memref<1x40x128xf32, #tpu.memory_space<vmem>>, %arg7: memref<1x128xi32, #tpu.memory_space<vmem>>) attributes {dimension_semantics = [#tpu.dimension_semantics<parallel>, #tpu.dimension_semantics<arbitrary>], iteration_bounds = array<i64: 1, 2>, scalar_prefetch = 0 : i64, scratch_operands = 1 : i64, tpu.core_type = #tpu.core_type<tc>, window_params = [{transform_indices = @transform_0, window_bounds = array<i64: 8, 128>}, {transform_indices = @transform_1, window_bounds = array<i64: 8, 128>}, {transform_indices = @transform_2, window_bounds = array<i64: 8, 128>}, {transform_indices = @transform_3, window_bounds = array<i64: 1, 128>}, {transform_indices = @transform_4, window_bounds = array<i64: 1, 40, 128>}]} {
    %c0_i32 = arith.constant 0 : i32
    %0 = arith.cmpi eq, %arg1, %c0_i32 : i32
    %1 = arith.extui %0 : i1 to i32
    %c0_i32_0 = arith.constant 0 : i32
    %2 = arith.cmpi ne, %1, %c0_i32_0 : i32
    scf.if %2 {
      %128 = tpu.iota {dimensions = array<i32: 1>} : vector<1x128xi32>
      %c0_68 = arith.constant 0 : index
      %c0_69 = arith.constant 0 : index
      %129 = vector.load %arg7[%c0_68, %c0_69] : memref<1x128xi32, #tpu.memory_space<vmem>>, vector<1x128xi32>
      tpu.vector_store %arg7[%c0_68, %c0_69], %128 {strides = array<i32>} : memref<1x128xi32, #tpu.memory_space<vmem>>, vector<1x128xi32>,
      %cst_70 = arith.constant 0.000000e+00 : f32
      %130 = vector.broadcast %cst_70 : f32 to vector<40x128xf32>
      %c0_71 = arith.constant 0 : index
      %c0_72 = arith.constant 0 : index
      %c0_73 = arith.constant 0 : index
      %131 = vector.load %arg6[%c0_71, %c0_72, %c0_73] : memref<1x40x128xf32, #tpu.memory_space<vmem>>, vector<1x40x128xf32>
      %132 = vector.shape_cast %131 : vector<1x40x128xf32> to vector<40x128xf32>
      %133 = vector.shape_cast %130 : vector<40x128xf32> to vector<1x40x128xf32>
      tpu.vector_store %arg6[%c0_71, %c0_72, %c0_73], %133 {strides = array<i32>} : memref<1x40x128xf32, #tpu.memory_space<vmem>>, vector<1x40x128xf32>,
    } else {
    }
    %c0 = arith.constant 0 : index
    %c0_1 = arith.constant 0 : index
    %3 = vector.load %arg2[%c0, %c0_1] : memref<8x128xf32, #tpu.memory_space<vmem>>, vector<8x128xf32>
    %c0_2 = arith.constant 0 : index
    %c0_3 = arith.constant 0 : index
    %4 = vector.load %arg3[%c0_2, %c0_3] : memref<8x128xf32, #tpu.memory_space<vmem>>, vector<8x128xf32>
    %c0_4 = arith.constant 0 : index
    %c0_5 = arith.constant 0 : index
    %5 = vector.load %arg4[%c0_4, %c0_5] : memref<8x128xf32, #tpu.memory_space<vmem>>, vector<8x128xf32>
    %c0_6 = arith.constant 0 : index
    %c0_7 = arith.constant 0 : index
    %6 = vector.load %arg5[%c0_6, %c0_7] : memref<1x128xi32, #tpu.memory_space<vmem>>, vector<1x128xi32>
    %c2_i32 = arith.constant 2 : i32
    %7 = arith.muli %arg0, %c2_i32 : i32
    %8 = arith.addi %7, %arg1 : i32
    %c128_i32 = arith.constant 128 : i32
    %9 = arith.muli %8, %c128_i32 : i32
    %c0_8 = arith.constant 0 : index
    %c0_9 = arith.constant 0 : index
    %10 = vector.load %arg7[%c0_8, %c0_9] : memref<1x128xi32, #tpu.memory_space<vmem>>, vector<1x128xi32>
    %c200_i32 = arith.constant 200 : i32
    %11 = arith.subi %c200_i32, %9 : i32
    %12 = vector.broadcast %11 : i32 to vector<1x128xi32>
    %13 = arith.cmpi slt, %10, %12 : vector<1x128xi32>
    %14 = arith.extui %13 : vector<1x128xi1> to vector<1x128xi32>
    %15 = arith.sitofp %14 : vector<1x128xi32> to vector<1x128xf32>
    %cst = arith.constant 1.250000e-01 : f32
    %16 = vector.broadcast %cst : f32 to vector<8x128xf32>
    %17 = arith.mulf %5, %16 : vector<8x128xf32>
    %18 = arith.addf %4, %17 : vector<8x128xf32>
    %cst_10 = arith.constant dense<0xFF800000> : vector<128xf32>
    %19 = vector.multi_reduction <maximumf>, %18, %cst_10 [0] : vector<8x128xf32> to vector<128xf32>
    %20 = vector.shape_cast %19 : vector<128xf32> to vector<1x128xf32>
    %21 = vector.broadcast %20 : vector<1x128xf32> to vector<8x128xf32>
    %22 = arith.subf %4, %21 : vector<8x128xf32>
    %cst_11 = arith.constant 7.99999952 : f32
    %23 = vector.broadcast %cst_11 : f32 to vector<8x128xf32>
    %24 = arith.mulf %22, %23 : vector<8x128xf32>
    %25 = arith.mulf %24, %24 : vector<8x128xf32>
    %26 = arith.mulf %25, %24 : vector<8x128xf32>
    %cst_12 = arith.constant 4.471500e-02 : f32
    %27 = vector.broadcast %cst_12 : f32 to vector<8x128xf32>
    %28 = arith.mulf %27, %26 : vector<8x128xf32>
    %29 = arith.addf %24, %28 : vector<8x128xf32>
    %cst_13 = arith.constant 0.797884583 : f32
    %30 = vector.broadcast %cst_13 : f32 to vector<8x128xf32>
    %31 = arith.mulf %30, %29 : vector<8x128xf32>
    %32 = math.tanh %31 : vector<8x128xf32>
    %cst_14 = arith.constant 1.000000e+00 : f32
    %33 = vector.broadcast %cst_14 : f32 to vector<8x128xf32>
    %34 = arith.addf %33, %32 : vector<8x128xf32>
    %cst_15 = arith.constant 5.000000e-01 : f32
    %35 = vector.broadcast %cst_15 : f32 to vector<8x128xf32>
    %36 = arith.mulf %35, %34 : vector<8x128xf32>
    %cst_16 = arith.constant dense<0xFF800000> : vector<128xf32>
    %37 = vector.multi_reduction <maximumf>, %4, %cst_16 [0] : vector<8x128xf32> to vector<128xf32>
    %38 = vector.shape_cast %37 : vector<128xf32> to vector<1x128xf32>
    %39 = vector.broadcast %38 : vector<1x128xf32> to vector<8x128xf32>
    %40 = arith.subf %4, %39 : vector<8x128xf32>
    %41 = math.exp %40 : vector<8x128xf32>
    %cst_17 = arith.constant dense<0.000000e+00> : vector<128xf32>
    %42 = vector.multi_reduction <add>, %41, %cst_17 [0] : vector<8x128xf32> to vector<128xf32>
    %43 = vector.shape_cast %42 : vector<128xf32> to vector<1x128xf32>
    %44 = math.log %43 : vector<1x128xf32>
    %45 = arith.addf %38, %44 : vector<1x128xf32>
    %cst_18 = arith.constant 9.99999993E-9 : f32
    %46 = vector.broadcast %cst_18 : f32 to vector<8x128xf32>
    %47 = arith.addf %3, %46 : vector<8x128xf32>
    %48 = math.log %47 : vector<8x128xf32>
    %49 = arith.mulf %3, %48 : vector<8x128xf32>
    %cst_19 = arith.constant dense<0.000000e+00> : vector<128xf32>
    %50 = vector.multi_reduction <add>, %49, %cst_19 [0] : vector<8x128xf32> to vector<128xf32>
    %51 = vector.shape_cast %50 : vector<128xf32> to vector<1x128xf32>
    %cst_20 = arith.constant 0.000000e+00 : f32
    %52 = vector.broadcast %cst_20 : f32 to vector<1x128xf32>
    %53 = arith.subf %52, %51 : vector<1x128xf32>
    %c0_i32_21 = arith.constant 0 : i32
    %54 = vector.broadcast %c0_i32_21 : i32 to vector<1x128xi32>
    %55 = arith.cmpi eq, %6, %54 : vector<1x128xi32>
    %56 = arith.andi %55, %13 : vector<1x128xi1>
    %57 = arith.extui %56 : vector<1x128xi1> to vector<1x128xi32>
    %58 = arith.sitofp %57 : vector<1x128xi32> to vector<1x128xf32>
    %c1_i32 = arith.constant 1 : i32
    %59 = vector.broadcast %c1_i32 : i32 to vector<1x128xi32>
    %60 = arith.cmpi eq, %6, %59 : vector<1x128xi32>
    %61 = arith.andi %60, %13 : vector<1x128xi1>
    %62 = arith.extui %61 : vector<1x128xi1> to vector<1x128xi32>
    %63 = arith.sitofp %62 : vector<1x128xi32> to vector<1x128xf32>
    %c0_22 = arith.constant 0 : index
    %c0_23 = arith.constant 0 : index
    %c0_24 = arith.constant 0 : index
    %64 = vector.load %arg6[%c0_22, %c0_23, %c0_24] : memref<1x40x128xf32, #tpu.memory_space<vmem>>, vector<1x8x128xf32>
    %65 = vector.shape_cast %64 : vector<1x8x128xf32> to vector<8x128xf32>
    %66 = arith.addf %65, %3 : vector<8x128xf32>
    %c0_25 = arith.constant 0 : index
    %c0_26 = arith.constant 0 : index
    %c0_27 = arith.constant 0 : index
    %67 = vector.load %arg6[%c0_25, %c0_26, %c0_27] : memref<1x40x128xf32, #tpu.memory_space<vmem>>, vector<1x8x128xf32>
    %68 = vector.shape_cast %67 : vector<1x8x128xf32> to vector<8x128xf32>
    %69 = vector.shape_cast %66 : vector<8x128xf32> to vector<1x8x128xf32>
    tpu.vector_store %arg6[%c0_25, %c0_26, %c0_27], %69 {strides = array<i32>} : memref<1x40x128xf32, #tpu.memory_space<vmem>>, vector<1x8x128xf32>,
    %c0_28 = arith.constant 0 : index
    %c8 = arith.constant 8 : index
    %c0_29 = arith.constant 0 : index
    %70 = vector.load %arg6[%c0_28, %c8, %c0_29] : memref<1x40x128xf32, #tpu.memory_space<vmem>>, vector<1x8x128xf32>
    %71 = vector.shape_cast %70 : vector<1x8x128xf32> to vector<8x128xf32>
    %72 = vector.broadcast %15 : vector<1x128xf32> to vector<8x128xf32>
    %73 = arith.mulf %36, %72 : vector<8x128xf32>
    %74 = arith.addf %71, %73 : vector<8x128xf32>
    %c0_30 = arith.constant 0 : index
    %c8_31 = arith.constant 8 : index
    %c0_32 = arith.constant 0 : index
    %75 = vector.load %arg6[%c0_30, %c8_31, %c0_32] : memref<1x40x128xf32, #tpu.memory_space<vmem>>, vector<1x8x128xf32>
    %76 = vector.shape_cast %75 : vector<1x8x128xf32> to vector<8x128xf32>
    %77 = vector.shape_cast %74 : vector<8x128xf32> to vector<1x8x128xf32>
    tpu.vector_store %arg6[%c0_30, %c8_31, %c0_32], %77 {strides = array<i32>} : memref<1x40x128xf32, #tpu.memory_space<vmem>>, vector<1x8x128xf32>,
    %c0_33 = arith.constant 0 : index
    %c16 = arith.constant 16 : index
    %c0_34 = arith.constant 0 : index
    %78 = vector.load %arg6[%c0_33, %c16, %c0_34] : memref<1x40x128xf32, #tpu.memory_space<vmem>>, vector<1x8x128xf32>
    %79 = vector.shape_cast %78 : vector<1x8x128xf32> to vector<8x128xf32>
    %80 = vector.broadcast %58 : vector<1x128xf32> to vector<8x128xf32>
    %81 = arith.mulf %3, %80 : vector<8x128xf32>
    %82 = arith.addf %79, %81 : vector<8x128xf32>
    %c0_35 = arith.constant 0 : index
    %c16_36 = arith.constant 16 : index
    %c0_37 = arith.constant 0 : index
    %83 = vector.load %arg6[%c0_35, %c16_36, %c0_37] : memref<1x40x128xf32, #tpu.memory_space<vmem>>, vector<1x8x128xf32>
    %84 = vector.shape_cast %83 : vector<1x8x128xf32> to vector<8x128xf32>
    %85 = vector.shape_cast %82 : vector<8x128xf32> to vector<1x8x128xf32>
    tpu.vector_store %arg6[%c0_35, %c16_36, %c0_37], %85 {strides = array<i32>} : memref<1x40x128xf32, #tpu.memory_space<vmem>>, vector<1x8x128xf32>,
    %c0_38 = arith.constant 0 : index
    %c24 = arith.constant 24 : index
    %c0_39 = arith.constant 0 : index
    %86 = vector.load %arg6[%c0_38, %c24, %c0_39] : memref<1x40x128xf32, #tpu.memory_space<vmem>>, vector<1x8x128xf32>
    %87 = vector.shape_cast %86 : vector<1x8x128xf32> to vector<8x128xf32>
    %88 = vector.broadcast %63 : vector<1x128xf32> to vector<8x128xf32>
    %89 = arith.mulf %3, %88 : vector<8x128xf32>
    %90 = arith.addf %87, %89 : vector<8x128xf32>
    %c0_40 = arith.constant 0 : index
    %c24_41 = arith.constant 24 : index
    %c0_42 = arith.constant 0 : index
    %91 = vector.load %arg6[%c0_40, %c24_41, %c0_42] : memref<1x40x128xf32, #tpu.memory_space<vmem>>, vector<1x8x128xf32>
    %92 = vector.shape_cast %91 : vector<1x8x128xf32> to vector<8x128xf32>
    %93 = vector.shape_cast %90 : vector<8x128xf32> to vector<1x8x128xf32>
    tpu.vector_store %arg6[%c0_40, %c24_41, %c0_42], %93 {strides = array<i32>} : memref<1x40x128xf32, #tpu.memory_space<vmem>>, vector<1x8x128xf32>,
    %c0_43 = arith.constant 0 : index
    %c32 = arith.constant 32 : index
    %c0_44 = arith.constant 0 : index
    %94 = vector.load %arg6[%c0_43, %c32, %c0_44] : memref<1x40x128xf32, #tpu.memory_space<vmem>>, vector<1x1x128xf32>
    %95 = vector.shape_cast %94 : vector<1x1x128xf32> to vector<1x128xf32>
    %96 = arith.mulf %45, %45 : vector<1x128xf32>
    %97 = arith.mulf %96, %15 : vector<1x128xf32>
    %98 = arith.addf %95, %97 : vector<1x128xf32>
    %c0_45 = arith.constant 0 : index
    %c32_46 = arith.constant 32 : index
    %c0_47 = arith.constant 0 : index
    %99 = vector.load %arg6[%c0_45, %c32_46, %c0_47] : memref<1x40x128xf32, #tpu.memory_space<vmem>>, vector<1x1x128xf32>
    %100 = vector.shape_cast %99 : vector<1x1x128xf32> to vector<1x128xf32>
    %101 = vector.shape_cast %98 : vector<1x128xf32> to vector<1x1x128xf32>
    tpu.vector_store %arg6[%c0_45, %c32_46, %c0_47], %101 {strides = array<i32>} : memref<1x40x128xf32, #tpu.memory_space<vmem>>, vector<1x1x128xf32>,
    %c0_48 = arith.constant 0 : index
    %c33 = arith.constant 33 : index
    %c0_49 = arith.constant 0 : index
    %102 = vector.load %arg6[%c0_48, %c33, %c0_49] : memref<1x40x128xf32, #tpu.memory_space<vmem>>, vector<1x1x128xf32>
    %103 = vector.shape_cast %102 : vector<1x1x128xf32> to vector<1x128xf32>
    %104 = arith.mulf %53, %58 : vector<1x128xf32>
    %105 = arith.addf %103, %104 : vector<1x128xf32>
    %c0_50 = arith.constant 0 : index
    %c33_51 = arith.constant 33 : index
    %c0_52 = arith.constant 0 : index
    %106 = vector.load %arg6[%c0_50, %c33_51, %c0_52] : memref<1x40x128xf32, #tpu.memory_space<vmem>>, vector<1x1x128xf32>
    %107 = vector.shape_cast %106 : vector<1x1x128xf32> to vector<1x128xf32>
    %108 = vector.shape_cast %105 : vector<1x128xf32> to vector<1x1x128xf32>
    tpu.vector_store %arg6[%c0_50, %c33_51, %c0_52], %108 {strides = array<i32>} : memref<1x40x128xf32, #tpu.memory_space<vmem>>, vector<1x1x128xf32>,
    %c0_53 = arith.constant 0 : index
    %c34 = arith.constant 34 : index
    %c0_54 = arith.constant 0 : index
    %109 = vector.load %arg6[%c0_53, %c34, %c0_54] : memref<1x40x128xf32, #tpu.memory_space<vmem>>, vector<1x1x128xf32>
    %110 = vector.shape_cast %109 : vector<1x1x128xf32> to vector<1x128xf32>
    %111 = arith.mulf %53, %63 : vector<1x128xf32>
    %112 = arith.addf %110, %111 : vector<1x128xf32>
    %c0_55 = arith.constant 0 : index
    %c34_56 = arith.constant 34 : index
    %c0_57 = arith.constant 0 : index
    %113 = vector.load %arg6[%c0_55, %c34_56, %c0_57] : memref<1x40x128xf32, #tpu.memory_space<vmem>>, vector<1x1x128xf32>
    %114 = vector.shape_cast %113 : vector<1x1x128xf32> to vector<1x128xf32>
    %115 = vector.shape_cast %112 : vector<1x128xf32> to vector<1x1x128xf32>
    tpu.vector_store %arg6[%c0_55, %c34_56, %c0_57], %115 {strides = array<i32>} : memref<1x40x128xf32, #tpu.memory_space<vmem>>, vector<1x1x128xf32>,
    %c0_58 = arith.constant 0 : index
    %c35 = arith.constant 35 : index
    %c0_59 = arith.constant 0 : index
    %116 = vector.load %arg6[%c0_58, %c35, %c0_59] : memref<1x40x128xf32, #tpu.memory_space<vmem>>, vector<1x1x128xf32>
    %117 = vector.shape_cast %116 : vector<1x1x128xf32> to vector<1x128xf32>
    %118 = arith.addf %117, %58 : vector<1x128xf32>
    %c0_60 = arith.constant 0 : index
    %c35_61 = arith.constant 35 : index
    %c0_62 = arith.constant 0 : index
    %119 = vector.load %arg6[%c0_60, %c35_61, %c0_62] : memref<1x40x128xf32, #tpu.memory_space<vmem>>, vector<1x1x128xf32>
    %120 = vector.shape_cast %119 : vector<1x1x128xf32> to vector<1x128xf32>
    %121 = vector.shape_cast %118 : vector<1x128xf32> to vector<1x1x128xf32>
    tpu.vector_store %arg6[%c0_60, %c35_61, %c0_62], %121 {strides = array<i32>} : memref<1x40x128xf32, #tpu.memory_space<vmem>>, vector<1x1x128xf32>,
    %c0_63 = arith.constant 0 : index
    %c36 = arith.constant 36 : index
    %c0_64 = arith.constant 0 : index
    %122 = vector.load %arg6[%c0_63, %c36, %c0_64] : memref<1x40x128xf32, #tpu.memory_space<vmem>>, vector<1x1x128xf32>
    %123 = vector.shape_cast %122 : vector<1x1x128xf32> to vector<1x128xf32>
    %124 = arith.addf %123, %63 : vector<1x128xf32>
    %c0_65 = arith.constant 0 : index
    %c36_66 = arith.constant 36 : index
    %c0_67 = arith.constant 0 : index
    %125 = vector.load %arg6[%c0_65, %c36_66, %c0_67] : memref<1x40x128xf32, #tpu.memory_space<vmem>>, vector<1x1x128xf32>
    %126 = vector.shape_cast %125 : vector<1x1x128xf32> to vector<1x128xf32>
    %127 = vector.shape_cast %124 : vector<1x128xf32> to vector<1x1x128xf32>
    tpu.vector_store %arg6[%c0_65, %c36_66, %c0_67], %127 {strides = array<i32>} : memref<1x40x128xf32, #tpu.memory_space<vmem>>, vector<1x1x128xf32>,
    return
  }
  func.func @transform_0(%arg0: i32, %arg1: i32) -> (i32, i32) {
    %c2_i32 = arith.constant 2 : i32
    %0 = arith.muli %arg0, %c2_i32 : i32
    %1 = arith.addi %0, %arg1 : i32
    %c0_i32 = arith.constant 0 : i32
    %c0_i32_0 = arith.constant 0 : i32
    return %c0_i32, %1 : i32, i32
  }
  func.func @transform_1(%arg0: i32, %arg1: i32) -> (i32, i32) {
    %c2_i32 = arith.constant 2 : i32
    %0 = arith.muli %arg0, %c2_i32 : i32
    %1 = arith.addi %0, %arg1 : i32
    %c0_i32 = arith.constant 0 : i32
    %c0_i32_0 = arith.constant 0 : i32
    return %c0_i32, %1 : i32, i32
  }
  func.func @transform_2(%arg0: i32, %arg1: i32) -> (i32, i32) {
    %c2_i32 = arith.constant 2 : i32
    %0 = arith.muli %arg0, %c2_i32 : i32
    %1 = arith.addi %0, %arg1 : i32
    %c0_i32 = arith.constant 0 : i32
    %c0_i32_0 = arith.constant 0 : i32
    return %c0_i32, %1 : i32, i32
  }
  func.func @transform_3(%arg0: i32, %arg1: i32) -> (i32, i32) {
    %c2_i32 = arith.constant 2 : i32
    %0 = arith.muli %arg0, %c2_i32 : i32
    %1 = arith.addi %0, %arg1 : i32
    %c0_i32 = arith.constant 0 : i32
    %c0_i32_0 = arith.constant 0 : i32
    return %c0_i32, %1 : i32, i32
  }
  func.func @transform_4(%arg0: i32, %arg1: i32) -> (i32, i32, i32) {
    %c0_i32 = arith.constant 0 : i32
    %c0_i32_0 = arith.constant 0 : i32
    %c0_i32_1 = arith.constant 0 : i32
    return %arg0, %c0_i32, %c0_i32_0 : i32, i32, i32
  }
}

</mosaic_0001>

<llo_original>
// kernel: tpu_custom_call.1
$region0: #{tpu_custom_call.1}
  #allocation0 [shape = 'u32[]', space=smem, size = 0x4, offset = 0x4, fixed_abs, tag = 'smem constant byte address 0x4 - core index']
  #allocation1 [shape = 'u32[144,128]{1,0:T(1,128)}', space=vmem, size = 0x12000, scoped, tag = 'internal scratch']
  #allocation2 [shape = 's32[1,128]{1,0:T(1,128)}', space=vmem, size = 0x200, scoped, tag = 'scratch operand']
  %s0 = inlined_call_operand.hbm [shape: f32[8,256], index: 0, kind: input, shape index: {}]
  %s1 = inlined_call_operand.hbm [shape: f32[8,256], index: 1, kind: input, shape index: {}]
  %s2 = inlined_call_operand.hbm [shape: f32[8,256], index: 2, kind: input, shape index: {}]
  %s3 = inlined_call_operand.vmem [shape: s32[1,256], index: 3, kind: input, shape index: {}]
  %s4 = inlined_call_operand.hbm [shape: f32[1,40,128], index: 4, kind: output, shape index: {}]
  %s5 = sld [smem:[#allocation0]]
  $region65: #{tpu_custom_call.1} parent=0
    _
  %s7 = ssub.s32 1, %s5
  %s8 = scalar_select 0, %s7, %s5
  $region1: #{tpu_custom_call.1} parent=0
    #allocation3 [shape = 'u8[8192]{0}', space=vmem, size = 0x2000, scoped, tag = 'input window, operand 0']
    #allocation4 [shape = 's32[2]{0}', space=sflag, size = 0x8, scoped, tag = 'scoped memory for tpu_custom_call.1']
    #allocation5 [shape = 's32[2]{0}', space=sflag, size = 0x8, scoped, tag = 'scoped memory for tpu_custom_call.1']
    #allocation6 [shape = 'u8[8192]{0}', space=vmem, size = 0x2000, scoped, tag = 'input window, operand 1']
    #allocation7 [shape = 's32[2]{0}', space=sflag, size = 0x8, scoped, tag = 'scoped memory for tpu_custom_call.1']
    #allocation8 [shape = 'u8[8192]{0}', space=vmem, size = 0x2000, scoped, tag = 'input window, operand 2']
    #allocation9 [shape = 'u8[20480]{0}', space=vmem, size = 0x5000, scoped, tag = 'output window, operand 0, single buffered']
    %9 = vsyncpa [#allocation4], 0
    %s10 = scalar_lea.sflag [#allocation4], 1
    %11 = vsyncpa %s10, 0
    %12 = vsyncpa [#allocation7], 0
    %s13 = scalar_lea.sflag [#allocation7], 1
    %14 = vsyncpa %s13, 0
    %15 = vsyncpa [#allocation5], 0
    loop: start=0, step=1, limit=4
    $region2: #{tpu_custom_call.1} parent=1 // loop_pre_header
      _
    $region3: #{tpu_custom_call.1} parent=1 // loop_header
      %s17 = sphi 0, %s21
      %p18 = scmp.ge.s32.totalorder %s17, 4
      %s24 = sphi 0, %s36
      %s25 = sphi 0, %s32
      %s26 = sphi 0, %s24
      %s27 = sphi 0, %s25
      %s28 = sphi 0, %s26
      %s29 = sphi 0, %s27
      %s43 = sphi 0, %s45
      %s46 = sphi 0, %s43
      %s47 = sphi 0, %s46
      %s63 = sphi 0, %s47
      %s73 = sphi 0, %s75
      %s76 = sphi 0, %s73
      %s77 = sphi 0, %s76
      %s93 = sphi 0, %s77
      %s103 = sphi 0, %s105
      %s106 = sphi 0, %s103
      %s107 = sphi 0, %s106
      %s123 = sphi 0, %s107
      %s133 = sphi 0, %s135
      %s136 = sphi 0, %s133
      %s137 = sphi 0, %s136
      %s153 = sphi 0, %s137
      %s159 = sphi 0, %s161
      %s162 = sphi 0, %s159
      %s163 = sphi 0, %s162
      %s179 = sphi 0, %s163
    $region4: #{tpu_custom_call.1} parent=1 // loop_header_branch
      %20 = sbr.rel (%p18) target = $region8
    $region5: #{tpu_custom_call.1} parent=1 // loop_body
      %s22 = ssub.s32 %s17, 1
      %s23 = ssub.s32 %s17, 2
      %s30 = sadd.s32 1, %s25
      %p31 = scmp.ge.s32.totalorder %s30, 2
      %s32 = scalar_select %p31, 0, %s30
      %s33 = sadd.s32 1, %s24
      %s34 = scalar_select %p31, %s33, %s24
      %p35 = scmp.ge.s32.totalorder %s34, 1
      %s36 = scalar_select %p35, 0, %s34
      %s37 = smul.u32 %s24, 2
      %s38 = sadd.s32 %s37, %s25
      %s39 = smul.u32 %s36, 2
      %s40 = sadd.s32 %s39, %s32
      %s41 = ssub.s32 %s38, %s40
      %p42 = scmp.eq.s32.totalorder %s41, 0
      %s44 = sadd.s32 %s43, 1
      %s45 = scalar_select %p42, %s43, %s44
      %p48 = pneg %p42
      %p49 = scmp.eq.s32.totalorder %s17, 1
      %p50 = por %p48, %p49
      %p51 = scmp.ne.s32.totalorder %s43, %s46
      %p52 = scmp.eq.s32.totalorder %s17, 0
      %p53 = por %p51, %p52
      %p54 = scmp.ne.s32.totalorder %s43, %s46
      %p55 = scmp.eq.s32.totalorder %s22, 1
      %p56 = por %p54, %p55
      %p57 = scmp.ne.s32.totalorder %s46, %s47
      %p58 = scmp.eq.s32.totalorder %s22, 0
      %p59 = por %p57, %p58
      %p60 = scmp.ne.s32.totalorder %s46, %s47
      %p61 = scmp.eq.s32.totalorder %s23, 1
      %p62 = por %p60, %p61
      %p64 = scmp.ne.s32.totalorder %s47, %s63
      %p65 = scmp.eq.s32.totalorder %s23, 0
      %p66 = por %p64, %p65
      %s67 = smul.u32 %s24, 2
      %s68 = sadd.s32 %s67, %s25
      %s69 = smul.u32 %s36, 2
      %s70 = sadd.s32 %s69, %s32
      %s71 = ssub.s32 %s68, %s70
      %p72 = scmp.eq.s32.totalorder %s71, 0
      %s74 = sadd.s32 %s73, 1
      %s75 = scalar_select %p72, %s73, %s74
      %p78 = pneg %p72
      %p79 = scmp.eq.s32.totalorder %s17, 1
      %p80 = por %p78, %p79
      %p81 = scmp.ne.s32.totalorder %s73, %s76
      %p82 = scmp.eq.s32.totalorder %s17, 0
      %p83 = por %p81, %p82
      %p84 = scmp.ne.s32.totalorder %s73, %s76
      %p85 = scmp.eq.s32.totalorder %s22, 1
      %p86 = por %p84, %p85
      %p87 = scmp.ne.s32.totalorder %s76, %s77
      %p88 = scmp.eq.s32.totalorder %s22, 0
      %p89 = por %p87, %p88
      %p90 = scmp.ne.s32.totalorder %s76, %s77
      %p91 = scmp.eq.s32.totalorder %s23, 1
      %p92 = por %p90, %p91
      %p94 = scmp.ne.s32.totalorder %s77, %s93
      %p95 = scmp.eq.s32.totalorder %s23, 0
      %p96 = por %p94, %p95
      %s97 = smul.u32 %s24, 2
      %s98 = sadd.s32 %s97, %s25
      %s99 = smul.u32 %s36, 2
      %s100 = sadd.s32 %s99, %s32
      %s101 = ssub.s32 %s98, %s100
      %p102 = scmp.eq.s32.totalorder %s101, 0
      %s104 = sadd.s32 %s103, 1
      %s105 = scalar_select %p102, %s103, %s104
      %p108 = pneg %p102
      %p109 = scmp.eq.s32.totalorder %s17, 1
      %p110 = por %p108, %p109
      %p111 = scmp.ne.s32.totalorder %s103, %s106
      %p112 = scmp.eq.s32.totalorder %s17, 0
      %p113 = por %p111, %p112
      %p114 = scmp.ne.s32.totalorder %s103, %s106
      %p115 = scmp.eq.s32.totalorder %s22, 1
      %p116 = por %p114, %p115
      %p117 = scmp.ne.s32.totalorder %s106, %s107
      %p118 = scmp.eq.s32.totalorder %s22, 0
      %p119 = por %p117, %p118
      %p120 = scmp.ne.s32.totalorder %s106, %s107
      %p121 = scmp.eq.s32.totalorder %s23, 1
      %p122 = por %p120, %p121
      %p124 = scmp.ne.s32.totalorder %s107, %s123
      %p125 = scmp.eq.s32.totalorder %s23, 0
      %p126 = por %p124, %p125
      %s127 = smul.u32 %s24, 2
      %s128 = sadd.s32 %s127, %s25
      %s129 = smul.u32 %s36, 2
      %s130 = sadd.s32 %s129, %s32
      %s131 = ssub.s32 %s128, %s130
      %p132 = scmp.eq.s32.totalorder %s131, 0
      %s134 = sadd.s32 %s133, 1
      %s135 = scalar_select %p132, %s133, %s134
      %p138 = pneg %p132
      %p139 = scmp.eq.s32.totalorder %s17, 1
      %p140 = por %p138, %p139
      %p141 = scmp.ne.s32.totalorder %s133, %s136
      %p142 = scmp.eq.s32.totalorder %s17, 0
      %p143 = por %p141, %p142
      %p144 = scmp.ne.s32.totalorder %s133, %s136
      %p145 = scmp.eq.s32.totalorder %s22, 1
      %p146 = por %p144, %p145
      %p147 = scmp.ne.s32.totalorder %s136, %s137
      %p148 = scmp.eq.s32.totalorder %s22, 0
      %p149 = por %p147, %p148
      %p150 = scmp.ne.s32.totalorder %s136, %s137
      %p151 = scmp.eq.s32.totalorder %s23, 1
      %p152 = por %p150, %p151
      %p154 = scmp.ne.s32.totalorder %s137, %s153
      %p155 = scmp.eq.s32.totalorder %s23, 0
      %p156 = por %p154, %p155
      %s157 = ssub.s32 %s24, %s36
      %p158 = scmp.eq.s32.totalorder %s157, 0
      %s160 = sadd.s32 %s159, 1
      %s161 = scalar_select %p158, %s159, %s160
      %p164 = pneg %p158
      %p165 = scmp.eq.s32.totalorder %s17, 1
      %p166 = por %p164, %p165
      %p167 = scmp.ne.s32.totalorder %s159, %s162
      %p168 = scmp.eq.s32.totalorder %s17, 0
      %p169 = por %p167, %p168
      %p170 = scmp.ne.s32.totalorder %s159, %s162
      %p171 = scmp.eq.s32.totalorder %s22, 1
      %p172 = por %p170, %p171
      %p173 = scmp.ne.s32.totalorder %s162, %s163
      %p174 = scmp.eq.s32.totalorder %s22, 0
      %p175 = por %p173, %p174
      %p176 = scmp.ne.s32.totalorder %s162, %s163
      %p177 = scmp.eq.s32.totalorder %s23, 1
      %p178 = por %p176, %p177
      %p180 = scmp.ne.s32.totalorder %s163, %s179
      %p181 = scmp.eq.s32.totalorder %s23, 0
      %p182 = por %p180, %p181
      %p183 = scmp.le.s32.totalorder 1, %s17
      %p184 = scmp.lt.s32.totalorder %s17, 3
      %p185 = pnand %p183, %p184
      %p186 = pneg %p185
      // Predicated region
      $region9: #{tpu_custom_call.1} parent=5 // pred_check
        _
      $region10: #{tpu_custom_call.1} parent=5 // pred_check_branch
        %188 = sbr.rel (%p185) target = $region12
      $region11: #{tpu_custom_call.1} parent=5 // pred_region
        %s189 = ssub.s32 %s17, 1
      $region12: #{tpu_custom_call.1} parent=5 // pred_fallthru
        _
      %p190 = scmp.lt.s32.totalorder %s17, 2
      // Predicated region
      $region13: #{tpu_custom_call.1} parent=5 // pred_check
        %p191 = pneg %p190
      $region14: #{tpu_custom_call.1} parent=5 // pred_check_branch
        %193 = sbr.rel (%p191) target = $region16
      $region15: #{tpu_custom_call.1} parent=5 // pred_region
        // Predicated region
        $region17: #{tpu_custom_call.1} parent=15 // pred_check
          %p194 = pneg %p53
        $region18: #{tpu_custom_call.1} parent=15 // pred_check_branch
          %196 = sbr.rel (%p194) target = $region20
        $region19: #{tpu_custom_call.1} parent=15 // pred_region
          %s197 = sand.u32 %s43, 1
          %s198 = scalar_lea.sflag [#allocation4], %s197
          %s199 = sand.u32 %s43, 1
          %s200 = smul.addr %s199, 8
          %s201 = scalar_lea.vmem [#allocation3], %s200
          %s202 = smul.u32 %s24, 2
          %s203 = sadd.s32 %s202, %s25
          %s205 = ssub.s32 128, 128
          %206 = vsyncadd %s198, %s205
          %s207 = smul.addr %s203, 128
          %s208 = scalar_lea.hbm %s0, %s207
          %s210 = sshll.u32 %s201, 4
          %s211 = int_to_ptr.vmem [resolvable:$true] %s210
          %213 = dma.hbm_to_vmem [thread:$0]  %s208, 128, %s211, %s198
        $region20: #{tpu_custom_call.1} parent=15 // pred_fallthru
          _
        // Predicated region
        $region21: #{tpu_custom_call.1} parent=15 // pred_check
          %p214 = pneg %p83
        $region22: #{tpu_custom_call.1} parent=15 // pred_check_branch
          %216 = sbr.rel (%p214) target = $region24
        $region23: #{tpu_custom_call.1} parent=15 // pred_region
          %s217 = sand.u32 %s17, 1
          %s218 = scalar_lea.sflag [#allocation7], %s217
          %s219 = sand.u32 %s73, 1
          %s220 = smul.addr %s219, 8
          %s221 = scalar_lea.vmem [#allocation6], %s220
          %s222 = smul.u32 %s24, 2
          %s223 = sadd.s32 %s222, %s25
          %s225 = ssub.s32 128, 128
          %226 = vsyncadd %s218, %s225
          %s227 = smul.addr %s223, 128
          %s228 = scalar_lea.hbm %s1, %s227
          %s230 = sshll.u32 %s221, 4
          %s231 = int_to_ptr.vmem [resolvable:$true] %s230
          %233 = dma.hbm_to_vmem [thread:$0]  %s228, 128, %s231, %s218
        $region24: #{tpu_custom_call.1} parent=15 // pred_fallthru
          _
        // Predicated region
        $region25: #{tpu_custom_call.1} parent=15 // pred_check
          %p234 = pneg %p113
        $region26: #{tpu_custom_call.1} parent=15 // pred_check_branch
          %236 = sbr.rel (%p234) target = $region28
        $region27: #{tpu_custom_call.1} parent=15 // pred_region
          %s237 = sand.u32 %s17, 1
          %s238 = scalar_lea.sflag [#allocation7], %s237
          %s239 = sand.u32 %s103, 1
          %s240 = smul.addr %s239, 8
          %s241 = scalar_lea.vmem [#allocation8], %s240
          %s242 = smul.u32 %s24, 2
          %s243 = sadd.s32 %s242, %s25
          %s245 = ssub.s32 128, 128
          %246 = vsyncadd %s238, %s245
          %s247 = smul.addr %s243, 128
          %s248 = scalar_lea.hbm %s2, %s247
          %s250 = sshll.u32 %s241, 4
          %s251 = int_to_ptr.vmem [resolvable:$true] %s250
          %253 = dma.hbm_to_vmem [thread:$0]  %s248, 128, %s251, %s238
        $region28: #{tpu_custom_call.1} parent=15 // pred_fallthru
          _
        // Predicated region
        $region29: #{tpu_custom_call.1} parent=15 // pred_check
          %p254 = pneg %p143
        $region30: #{tpu_custom_call.1} parent=15 // pred_check_branch
          %256 = sbr.rel (%p254) target = $region32
        $region31: #{tpu_custom_call.1} parent=15 // pred_region
          %s257 = smul.u32 %s24, 2
          %s258 = sadd.s32 %s257, %s25
          %p259 = scmp.lt.s32.totalorder %s258, 1
          %s260 = scalar_select %p259, %s258, 1
          %s261 = scalar_lea.vmem %s3, %s260
          %s262 = smul.u32 %s24, 2
          %s263 = sadd.s32 %s262, %s25
        $region32: #{tpu_custom_call.1} parent=15 // pred_fallthru
          _
      $region16: #{tpu_custom_call.1} parent=5 // pred_fallthru
        _
      %p264 = scmp.le.s32.totalorder 1, %s17
      %p265 = scmp.lt.s32.totalorder %s17, 3
      %p266 = pnand %p264, %p265
      %p267 = pneg %p266
      // Predicated region
      $region33: #{tpu_custom_call.1} parent=5 // pred_check
        _
      $region34: #{tpu_custom_call.1} parent=5 // pred_check_branch
        %269 = sbr.rel (%p266) target = $region36
      $region35: #{tpu_custom_call.1} parent=5 // pred_region
        %s270 = ssub.s32 %s17, 1
        %s271 = sand.u32 %s46, 1
        %s272 = scalar_lea.sflag [#allocation4], %s271
        %s273 = sand.u32 %s46, 1
        %s274 = smul.addr %s273, 8
        %s275 = scalar_lea.vmem [#allocation3], %s274
        // Predicated region
        $region37: #{tpu_custom_call.1} parent=35 // pred_check
          %p276 = pneg %p59
        $region38: #{tpu_custom_call.1} parent=35 // pred_check_branch
          %278 = sbr.rel (%p276) target = $region40
        $region39: #{tpu_custom_call.1} parent=35 // pred_region
          %279 = dma.done %s272, 128
        $region40: #{tpu_custom_call.1} parent=35 // pred_fallthru
          _
        %s280 = sand.u32 %s22, 1
        %s281 = scalar_lea.sflag [#allocation7], %s280
        %s282 = sand.u32 %s76, 1
        %s283 = smul.addr %s282, 8
        %s284 = scalar_lea.vmem [#allocation6], %s283
        // Predicated region
        $region41: #{tpu_custom_call.1} parent=35 // pred_check
          %p285 = pneg %p89
        $region42: #{tpu_custom_call.1} parent=35 // pred_check_branch
          %287 = sbr.rel (%p285) target = $region44
        $region43: #{tpu_custom_call.1} parent=35 // pred_region
          %288 = dma.done %s281, 128
        $region44: #{tpu_custom_call.1} parent=35 // pred_fallthru
          _
        %s289 = sand.u32 %s22, 1
        %s290 = scalar_lea.sflag [#allocation7], %s289
        %s291 = sand.u32 %s106, 1
        %s292 = smul.addr %s291, 8
        %s293 = scalar_lea.vmem [#allocation8], %s292
        // Predicated region
        $region45: #{tpu_custom_call.1} parent=35 // pred_check
          %p294 = pneg %p119
        $region46: #{tpu_custom_call.1} parent=35 // pred_check_branch
          %296 = sbr.rel (%p294) target = $region48
        $region47: #{tpu_custom_call.1} parent=35 // pred_region
          %297 = dma.done %s290, 128
        $region48: #{tpu_custom_call.1} parent=35 // pred_fallthru
          _
        %s298 = sand.u32 %s46, 1
        %s299 = scalar_lea.sflag [#allocation4], %s298
        %s300 = sand.u32 %s46, 1
        %s301 = smul.addr %s300, 8
        %s302 = scalar_lea.vmem [#allocation3], %s301
        %p303 = pneg %p59
        %p304 = pneg %p56
        %s305 = sand.u32 %s22, 1
        %s306 = scalar_lea.sflag [#allocation7], %s305
        %s307 = sand.u32 %s76, 1
        %s308 = smul.addr %s307, 8
        %s309 = scalar_lea.vmem [#allocation6], %s308
        %p310 = pneg %p89
        %p311 = pneg %p86
        %s312 = sand.u32 %s22, 1
        %s313 = scalar_lea.sflag [#allocation7], %s312
        %s314 = sand.u32 %s106, 1
        %s315 = smul.addr %s314, 8
        %s316 = scalar_lea.vmem [#allocation8], %s315
        %p317 = pneg %p119
        %p318 = pneg %p116
        %s319 = smul.u32 %s26, 2
        %s320 = sadd.s32 %s319, %s27
        %p321 = scmp.lt.s32.totalorder %s320, 1
        %s322 = scalar_select %p321, %s320, 1
        %s323 = scalar_lea.vmem %s3, %s322
        %p324 = pneg %p149
        %p325 = pneg %p146
        %p326 = pneg %p175
        %p327 = pneg %p172
        %s328 = smul.u32 %s26, 2
        %s329 = sadd.s32 %s328, %s27
        %s330 = smul.u32 %s26, 2
        %s331 = sadd.s32 %s330, %s27
        %s332 = smul.u32 %s26, 2
        %s333 = sadd.s32 %s332, %s27
        %s334 = smul.u32 %s26, 2
        %s335 = sadd.s32 %s334, %s27
        %p336 = scmp.lt.s32.totalorder %s335, 1
        %s337 = scalar_select %p336, %s335, 1
        %s338 = scalar_lea.vmem %s3, %s337
        %s339 = smul.u32 %s26, 2
        %s340 = sadd.s32 %s339, %s27
        %p341 = scmp.eq.s32.totalorder %s27, 0
        // Predicated region
        $region49: #{tpu_custom_call.1} parent=35 // pred_check
          %p342 = pneg %p341
        $region50: #{tpu_custom_call.1} parent=35 // pred_check_branch
          %344 = sbr.rel (%p342) target = $region52
        $region51: #{tpu_custom_call.1} parent=35 // pred_region
          %v345 = vlaneseq
          %v346 = vand.u32 %v345, 127
          %347 = vst [vmem:[#allocation2] sm:$0x1] %v346
          %348 = vst [vmem:[#allocation9] sm:$0xff] 0.0
          %349 = vst [vmem:[#allocation9 + $0x8] sm:$0xff] 0.0
          %350 = vst [vmem:[#allocation9 + $0x10] sm:$0xff] 0.0
          %351 = vst [vmem:[#allocation9 + $0x18] sm:$0xff] 0.0
          %352 = vst [vmem:[#allocation9 + $0x20] sm:$0xff] 0.0
        $region52: #{tpu_custom_call.1} parent=35 // pred_fallthru
          _
        %v353 = vld [vmem:[%s275] sm:$0xff]
        %v354 = vld [vmem:[%s284] sm:$0xff]
        %v355 = vld [vmem:[%s293] sm:$0xff]
        %v356 = vld [vmem:[%s338] sm:$0x1]
        %s357 = smul.u32 %s26, 2
        %s358 = sadd.s32 %s357, %s27
        %s359 = smul.u32 %s358, 128
        %v360 = vld [vmem:[#allocation2] sm:$0x1]
        %s361 = ssub.s32 200, %s359
        %v362 = vstv %s361
        %vm363 = vcmp.lt.s32.totalorder %v360, %v362
        %v364 = vsel %vm363, 1, 0
        %v365 = vcvt.s32.f32 %v364
        %v366 = vmul.f32 %v355, 0.125
        %v367 = vadd.f32 %v354, %v366
        %v368 = vrot.slane %v367, 4
        %v369 = vmax.f32 %v367, %v368
        %v370 = vrot.slane %v369, 2
        %v371 = vmax.f32 %v369, %v370
        %v372 = vrot.slane %v371, 1
        %v373 = vmax.f32 %v371, %v372
        %v374 = vsub.f32 %v354, %v373
        %v375 = vmul.f32 %v374, 7.9999995
        %v376 = vmul.f32 %v375, %v375
        %v377 = vmul.f32 %v376, %v375
        %v378 = vmul.f32 %v377, 0.044715
        %v379 = vadd.f32 %v375, %v378
        %v380 = vmul.f32 %v379, 0.7978846
        %v381 = vtanh.pop %v380
        %v382 = vadd.f32 %v381, 1.0
        %v383 = vmul.f32 %v382, 0.5
        %v384 = vrot.slane %v354, 4
        %v385 = vmax.f32 %v354, %v384
        %v386 = vrot.slane %v385, 2
        %v387 = vmax.f32 %v385, %v386
        %v388 = vrot.slane %v387, 1
        %v389 = vmax.f32 %v387, %v388
        %v390 = vsub.f32 %v354, %v389
        %v391 = vmul.f32 %v390, 1.442695
        %v392 = vpow.pop %v391
        %v393 = vrot.slane %v392, 4
        %v394 = vadd.f32 %v392, %v393
        %v395 = vrot.slane %v394, 2
        %v396 = vadd.f32 %v394, %v395
        %v397 = vrot.slane %v396, 1
        %v398 = vadd.f32 %v396, %v397
        %v399 = vlog2.pop %v398
        %v400 = vmul.f32 %v399, 0.6931472
        %v401 = vadd.f32 %v389, %v400
        %v402 = vadd.f32 %v353, 1e-08
        %v403 = vlog2.pop %v402
        %v404 = vmul.f32 %v403, 0.6931472
        %v405 = vmul.f32 %v353, %v404
        %v406 = vrot.slane %v405, 4
        %v407 = vadd.f32 %v405, %v406
        %v408 = vrot.slane %v407, 2
        %v409 = vadd.f32 %v407, %v408
        %v410 = vrot.slane %v409, 1
        %v411 = vadd.f32 %v409, %v410
        %v412 = vsub.f32 0.0, %v411
        %vm413 = vcmp.eq.s32.totalorder %v356, 0
        %vm414 = vmand %vm413, %vm363
        %v415 = vsel %vm414, 1, 0
        %v416 = vcvt.s32.f32 %v415
        %vm417 = vcmp.eq.s32.totalorder %v356, 1
        %vm418 = vmand %vm417, %vm363
        %v419 = vsel %vm418, 1, 0
        %v420 = vcvt.s32.f32 %v419
        %v421 = vld [vmem:[#allocation9] sm:$0xff]
        %v422 = vadd.f32 %v421, %v353
        %423 = vst [vmem:[#allocation9] sm:$0xff] %v422
        %v424 = vld [vmem:[#allocation9 + $0x8] sm:$0xff]
        %v426 = vlaneseq
        %v427 = vshrl.u32 %v426, 7
        %v428 = vsub.s32 0, %v427
        %v429 = vrot.slane %v365, %v428
        %v431 = vmul.f32 %v383, %v429
        %v432 = vadd.f32 %v424, %v431
        %433 = vst [vmem:[#allocation9 + $0x8] sm:$0xff] %v432
        %v434 = vld [vmem:[#allocation9 + $0x10] sm:$0xff]
        %v436 = vlaneseq
        %v437 = vshrl.u32 %v436, 7
        %v438 = vsub.s32 0, %v437
        %v439 = vrot.slane %v416, %v438
        %v441 = vmul.f32 %v353, %v439
        %v442 = vadd.f32 %v434, %v441
        %443 = vst [vmem:[#allocation9 + $0x10] sm:$0xff] %v442
        %v444 = vld [vmem:[#allocation9 + $0x18] sm:$0xff]
        %v446 = vlaneseq
        %v447 = vshrl.u32 %v446, 7
        %v448 = vsub.s32 0, %v447
        %v449 = vrot.slane %v420, %v448
        %v451 = vmul.f32 %v353, %v449
        %v452 = vadd.f32 %v444, %v451
        %453 = vst [vmem:[#allocation9 + $0x18] sm:$0xff] %v452
        %v454 = vld [vmem:[#allocation9 + $0x20] sm:$0x1]
        %v455 = vmul.f32 %v401, %v401
        %v456 = vmul.f32 %v455, %v365
        %v457 = vadd.f32 %v454, %v456
        %458 = vst [vmem:[#allocation9 + $0x20] sm:$0x1] %v457
        %v459 = vld [vmem:[#allocation9 + $0x21] sm:$0x1]
        %v460 = vmul.f32 %v412, %v416
        %v461 = vadd.f32 %v459, %v460
        %462 = vst [vmem:[#allocation9 + $0x21] sm:$0x1] %v461
        %v463 = vld [vmem:[#allocation9 + $0x22] sm:$0x1]
        %v464 = vmul.f32 %v412, %v420
        %v465 = vadd.f32 %v463, %v464
        %466 = vst [vmem:[#allocation9 + $0x22] sm:$0x1] %v465
        %v467 = vld [vmem:[#allocation9 + $0x23] sm:$0x1]
        %v468 = vadd.f32 %v467, %v416
        %469 = vst [vmem:[#allocation9 + $0x23] sm:$0x1] %v468
        %v470 = vld [vmem:[#allocation9 + $0x24] sm:$0x1]
        %v471 = vadd.f32 %v470, %v420
        %472 = vst [vmem:[#allocation9 + $0x24] sm:$0x1] %v471
        // Predicated region
        $region53: #{tpu_custom_call.1} parent=35 // pred_check
          %p473 = pneg %p172
        $region54: #{tpu_custom_call.1} parent=35 // pred_check_branch
          %475 = sbr.rel (%p473) target = $region56
        $region55: #{tpu_custom_call.1} parent=35 // pred_region
          %s477 = ssub.s32 640, 640
          %478 = vsyncadd [#allocation5], %s477
          %s479 = smul.addr %s26, 5
          %s480 = smul.addr %s479, 128
          %s481 = scalar_lea.hbm %s4, %s480
          %s482 = sshll.u32 [#allocation9], 4
          %s483 = int_to_ptr.vmem [resolvable:$true] %s482
          %488 = dma.vmem_to_hbm [thread:$0]  %s483, 640, %s481, [#allocation5], 128, 128, 8
        $region56: #{tpu_custom_call.1} parent=35 // pred_fallthru
          _
        // Predicated region
        $region57: #{tpu_custom_call.1} parent=35 // pred_check
          %p489 = pneg %p172
        $region58: #{tpu_custom_call.1} parent=35 // pred_check_branch
          %491 = sbr.rel (%p489) target = $region60
        $region59: #{tpu_custom_call.1} parent=35 // pred_region
          %492 = dma.done [#allocation5], 640
        $region60: #{tpu_custom_call.1} parent=35 // pred_fallthru
          _
      $region36: #{tpu_custom_call.1} parent=5 // pred_fallthru
        _
      %p493 = scmp.le.s32.totalorder 2, %s17
      // Predicated region
      $region61: #{tpu_custom_call.1} parent=5 // pred_check
        %p494 = pneg %p493
      $region62: #{tpu_custom_call.1} parent=5 // pred_check_branch
        %496 = sbr.rel (%p494) target = $region64
      $region63: #{tpu_custom_call.1} parent=5 // pred_region
        %s497 = ssub.s32 %s17, 2
      $region64: #{tpu_custom_call.1} parent=5 // pred_fallthru
        _
    $region6: #{tpu_custom_call.1} parent=1 // loop_footer
      %s21 = sadd.s32 1, %s17
    $region7: #{tpu_custom_call.1} parent=1 // loop_footer_branch
      %16 = sbr.rel target = $region3
    $region8: #{tpu_custom_call.1} parent=1 // loop_exit
      _
    %498 = vsyncpa [#allocation4], 1
    %s499 = scalar_lea.sflag [#allocation4], 1
    %500 = vsyncpa %s499, 1
    %501 = vsyncpa [#allocation7], 1
    %s502 = scalar_lea.sflag [#allocation7], 1
    %503 = vsyncpa %s502, 1
    %504 = vsyncpa [#allocation5], 1
    %s505 = scalar_lea.sflag [#allocation5], 1
    %506 = vsyncpa %s505, 1

</llo_original>
